<compile_context>
chip_gen: v7x
topology: tpu7x:2x2x1
jax: 0.10.0
libtpu: 0.0.40
codegen_flags: <defaults>
</compile_context>

<pallas_src>
import numpy as np
import jax
import jax.numpy as jnp
from jax import lax
from jax.experimental import pallas as pl
from jax.experimental.pallas import tpu as pltpu


def _round_up(x, m):
    return ((x + m - 1) // m) * m


def critic_kernel(s_ref, a_ref, w1s_ref, w1a_ref, b1_ref, w2_ref, b2_ref,
                  w3_ref, b3_ref, o_ref):
    """Fused 3-layer MLP on one batch tile.

    h1 = relu(s @ W1s + a @ W1a + b1)     (concat folded into two matmuls)
    h2 = relu(h1 @ W2 + b2)
    q  = W3_row @ h2^T + b3               -> lane-dense (1, TM) output row
    """
    h1 = jnp.dot(s_ref[...], w1s_ref[...], preferred_element_type=jnp.float32)
    h1 = h1 + jnp.dot(a_ref[...], w1a_ref[...],
                      preferred_element_type=jnp.float32)
    h1 = jnp.maximum(h1 + b1_ref[...], 0.0)                   # (TM, H1)

    h2 = jnp.dot(h1, w2_ref[...], preferred_element_type=jnp.float32)
    h2 = jnp.maximum(h2 + b2_ref[...], 0.0)                   # (TM, H2)

    # Final layer on the (otherwise idle) MXU, producing a lane-dense row:
    # (1, H2) x (TM, H2) contracted on H2 -> (1, TM).
    q = lax.dot_general(w3_ref[...], h2,
                        dimension_numbers=(((1,), (1,)), ((), ())),
                        preferred_element_type=jnp.float32)
    o_ref[...] = (q + b3_ref[0]).astype(o_ref.dtype)          # SMEM scalar bias


def critic_forward(state, action, params, *, block_b=2048):
    """state: (B, S), action: (B, A)  ->  Q-values (B, 1)."""
    w1s, w1a, b1, w2, b2, w3, b3 = params
    B, S = state.shape
    A = action.shape[1]
    H1 = w1s.shape[1]
    H2 = w2.shape[1]

    # ---- batch tiling ----------------------------------------------------
    # TM is a multiple of 128 so the (1, TM) output block is lane-dense
    # (unmasked stores, contiguous HBM writeback).  Use >= 2 grid steps
    # whenever that doesn't increase padding (B > 128) so both v7x
    # TensorCores get work; otherwise one big tile (per-step overhead
    # ~0.35 us dominates tiny tiles).  TM is computed from cdiv(B, n_tiles)
    # so batches just above block_b don't pad ~2x.
    n_tiles = max(pl.cdiv(B, block_b), 2 if B > 128 else 1)
    TM = _round_up(pl.cdiv(B, n_tiles), 128)
    B_pad = n_tiles * TM
    if B_pad != B:
        pad = B_pad - B
        state = jnp.pad(state, ((0, pad), (0, 0)))
        action = jnp.pad(action, ((0, pad), (0, 0)))

    grid = (n_tiles,)

    tile = lambda r, c: pl.BlockSpec((r, c), lambda i: (i, 0))       # batch-tiled
    resident = lambda r, c: pl.BlockSpec((r, c), lambda i: (0, 0))   # stays in VMEM

    out = pl.pallas_call(
        critic_kernel,
        out_shape=jax.ShapeDtypeStruct((1, B_pad), jnp.float32),
        grid=grid,
        in_specs=[
            tile(TM, S),                      # state tile
            tile(TM, A),                      # action tile
            resident(S, H1),                  # W1 (state rows)
            resident(A, H1),                  # W1 (action rows)
            resident(1, H1),                  # b1
            resident(H1, H2),                 # W2
            resident(1, H2),                  # b2
            resident(1, H2),                  # w3 as a row vector
            pl.BlockSpec(memory_space=pltpu.MemorySpace.SMEM),   # b3 scalar
        ],
        # Lane-dense output: each grid step writes a disjoint (1, TM) lane block.
        out_specs=pl.BlockSpec((1, TM), lambda i: (0, i)),
        compiler_params=pltpu.CompilerParams(
            dimension_semantics=("parallel",),      # shards batch on v7x's 2 TCs
            vmem_limit_bytes=32 * 1024 * 1024,      # safe on v5e/v6e/v7x; ~8 MiB used
        ),
    )(state, action, w1s, w1a, b1, w2, b2, w3, b3)

    # (1, B_pad) row -> (B, 1) column: same row-major bytes, free reshape.
    return out[0, :B].reshape(B, 1)


def init_critic_params(key, state_dim, action_dim, hidden_in, hidden_out):
    """Deterministic init mirroring the PyTorch module's reset_parameters.

    Weights are stored transposed, (in_features, out_features), so the kernel
    computes x @ W.  hidden_init in the reference uses weight.size()[0] ==
    out_features as "fan_in"; reproduced exactly.  Biases keep PyTorch's
    default nn.Linear init (reset_parameters does not touch them).
    W1 is split into state rows / action rows so the concat can be fused.
    """
    in_critic = state_dim + action_dim
    k1, k2, k3, kb1, kb2, kb3 = jax.random.split(key, 6)

    lim1 = 1.0 / np.sqrt(hidden_in)      # fc1.weight.size(0) == hidden_in
    lim2 = 1.0 / np.sqrt(hidden_out)     # fc2.weight.size(0) == hidden_out
    lim3 = 3e-3

    w1 = jax.random.uniform(k1, (in_critic, hidden_in), jnp.float32, -lim1, lim1)
    w1s, w1a = w1[:state_dim], w1[state_dim:]
    w2 = jax.random.uniform(k2, (hidden_in, hidden_out), jnp.float32, -lim2, lim2)
    w3 = jax.random.uniform(k3, (1, hidden_out), jnp.float32, -lim3, lim3)  # row

    bl1 = 1.0 / np.sqrt(in_critic)
    bl2 = 1.0 / np.sqrt(hidden_in)
    bl3 = 1.0 / np.sqrt(hidden_out)
    b1 = jax.random.uniform(kb1, (1, hidden_in), jnp.float32, -bl1, bl1)
    b2 = jax.random.uniform(kb2, (1, hidden_out), jnp.float32, -bl2, bl2)
    b3 = jax.random.uniform(kb3, (1,), jnp.float32, -bl3, bl3)

    return (w1s, w1a, b1, w2, b2, w3, b3)


def critic_reference(state, action, params):
    """Pure-JAX reference of the PyTorch forward, for correctness check."""
    w1s, w1a, b1, w2, b2, w3, b3 = params
    x = jnp.concatenate([state, action], axis=1)
    w1 = jnp.concatenate([w1s, w1a], axis=0)
    x = jax.nn.relu(x @ w1 + b1)
    x = jax.nn.relu(x @ w2 + b2)
    return x @ w3.T + b3[0]


if __name__ == "__main__":
    # Small shapes consistent with a MADDPG-style critic.
    state_dim = 24
    action_dim = 8
    hidden_in_critic = 64
    hidden_out_critic = 32

    key = jax.random.PRNGKey(0)
    kp, ks, ka = jax.random.split(key, 3)
    params = init_critic_params(kp, state_dim, action_dim,
                                hidden_in_critic, hidden_out_critic)

    # Case 1: tiny batch (single 128-row tile, padding path).
    batch = 8
    state = jax.random.normal(ks, (batch, state_dim), jnp.float32)
    action = jax.random.normal(ka, (batch, action_dim), jnp.float32)
    q = jax.block_until_ready(critic_forward(state, action, params))
    q_ref = critic_reference(state, action, params)
    np.testing.assert_allclose(np.asarray(q), np.asarray(q_ref),
                               rtol=1e-5, atol=1e-5)
    assert q.shape == (batch, 1)

    # Case 2: batch > 128 -> 2 grid steps (megacore path) + padding.
    batch2 = 300
    ks2, ka2 = jax.random.split(jax.random.PRNGKey(1))
    state2 = jax.random.normal(ks2, (batch2, state_dim), jnp.float32)
    action2 = jax.random.normal(ka2, (batch2, action_dim), jnp.float32)
    q2 = jax.block_until_ready(critic_forward(state2, action2, params))
    q2_ref = critic_reference(state2, action2, params)
    np.testing.assert_allclose(np.asarray(q2), np.asarray(q2_ref),
                               rtol=1e-5, atol=1e-5)
    assert q2.shape == (batch2, 1)

    print("KERNEL_OK")
</pallas_src>

<mosaic_0001>
module attributes {stable_mosaic.version = 11 : i64} {
  func.func @critic_kernel(%arg0: i32, %arg1: memref<128x24xf32, #tpu.memory_space<vmem>>, %arg2: memref<128x8xf32, #tpu.memory_space<vmem>>, %arg3: memref<24x64xf32, #tpu.memory_space<vmem>>, %arg4: memref<8x64xf32, #tpu.memory_space<vmem>>, %arg5: memref<1x64xf32, #tpu.memory_space<vmem>>, %arg6: memref<64x32xf32, #tpu.memory_space<vmem>>, %arg7: memref<1x32xf32, #tpu.memory_space<vmem>>, %arg8: memref<1x32xf32, #tpu.memory_space<vmem>>, %arg9: memref<1xf32, #tpu.memory_space<smem>>, %arg10: memref<1x128xf32, #tpu.memory_space<vmem>>) attributes {dimension_semantics = [#tpu.dimension_semantics<parallel>], iteration_bounds = array<i64: 1>, scalar_prefetch = 0 : i64, scratch_operands = 0 : i64, tpu.core_type = #tpu.core_type<tc>, window_params = [{transform_indices = @transform_0, window_bounds = array<i64: 128, 24>}, {transform_indices = @transform_1, window_bounds = array<i64: 128, 8>}, {pipeline_mode = #tpu.pipeline_mode<synchronous>, transform_indices = @transform_2, window_bounds = array<i64: 24, 64>}, {pipeline_mode = #tpu.pipeline_mode<synchronous>, transform_indices = @transform_3, window_bounds = array<i64: 8, 64>}, {pipeline_mode = #tpu.pipeline_mode<synchronous>, transform_indices = @transform_4, window_bounds = array<i64: 1, 64>}, {pipeline_mode = #tpu.pipeline_mode<synchronous>, transform_indices = @transform_5, window_bounds = array<i64: 64, 32>}, {pipeline_mode = #tpu.pipeline_mode<synchronous>, transform_indices = @transform_6, window_bounds = array<i64: 1, 32>}, {pipeline_mode = #tpu.pipeline_mode<synchronous>, transform_indices = @transform_7, window_bounds = array<i64: 1, 32>}, {transform_indices = @transform_8, window_bounds = array<i64: 1>}, {transform_indices = @transform_9, window_bounds = array<i64: 1, 128>}]} {
    %c0 = arith.constant 0 : index
    %c0_0 = arith.constant 0 : index
    %0 = vector.load %arg1[%c0, %c0_0] : memref<128x24xf32, #tpu.memory_space<vmem>>, vector<128x24xf32>
    %c0_1 = arith.constant 0 : index
    %c0_2 = arith.constant 0 : index
    %1 = vector.load %arg3[%c0_1, %c0_2] : memref<24x64xf32, #tpu.memory_space<vmem>>, vector<24x64xf32>
    %cst = arith.constant dense<0.000000e+00> : vector<128x64xf32>
    %2 = tpu.matmul %0, %1, %cst {dimension_numbers = #tpu.dot_dimension_numbers<[1], [0], [0], [1], [0, 0, 1, 1], [], []>} : vector<128x24xf32>, vector<24x64xf32>, vector<128x64xf32> -> vector<128x64xf32>
    %c0_3 = arith.constant 0 : index
    %c0_4 = arith.constant 0 : index
    %3 = vector.load %arg2[%c0_3, %c0_4] : memref<128x8xf32, #tpu.memory_space<vmem>>, vector<128x8xf32>
    %c0_5 = arith.constant 0 : index
    %c0_6 = arith.constant 0 : index
    %4 = vector.load %arg4[%c0_5, %c0_6] : memref<8x64xf32, #tpu.memory_space<vmem>>, vector<8x64xf32>
    %cst_7 = arith.constant dense<0.000000e+00> : vector<128x64xf32>
    %5 = tpu.matmul %3, %4, %cst_7 {dimension_numbers = #tpu.dot_dimension_numbers<[1], [0], [0], [1], [0, 0, 1, 1], [], []>} : vector<128x8xf32>, vector<8x64xf32>, vector<128x64xf32> -> vector<128x64xf32>
    %6 = arith.addf %2, %5 : vector<128x64xf32>
    %c0_8 = arith.constant 0 : index
    %c0_9 = arith.constant 0 : index
    %7 = vector.load %arg5[%c0_8, %c0_9] : memref<1x64xf32, #tpu.memory_space<vmem>>, vector<1x64xf32>
    %8 = vector.broadcast %7 : vector<1x64xf32> to vector<128x64xf32>
    %9 = arith.addf %6, %8 : vector<128x64xf32>
    %cst_10 = arith.constant 0.000000e+00 : f32
    %10 = vector.broadcast %cst_10 : f32 to vector<128x64xf32>
    %11 = arith.maximumf %9, %10 : vector<128x64xf32>
    %c0_11 = arith.constant 0 : index
    %c0_12 = arith.constant 0 : index
    %12 = vector.load %arg6[%c0_11, %c0_12] : memref<64x32xf32, #tpu.memory_space<vmem>>, vector<64x32xf32>
    %cst_13 = arith.constant dense<0.000000e+00> : vector<128x32xf32>
    %13 = tpu.matmul %11, %12, %cst_13 {dimension_numbers = #tpu.dot_dimension_numbers<[1], [0], [0], [1], [0, 0, 1, 1], [], []>} : vector<128x64xf32>, vector<64x32xf32>, vector<128x32xf32> -> vector<128x32xf32>
    %c0_14 = arith.constant 0 : index
    %c0_15 = arith.constant 0 : index
    %14 = vector.load %arg7[%c0_14, %c0_15] : memref<1x32xf32, #tpu.memory_space<vmem>>, vector<1x32xf32>
    %15 = vector.broadcast %14 : vector<1x32xf32> to vector<128x32xf32>
    %16 = arith.addf %13, %15 : vector<128x32xf32>
    %cst_16 = arith.constant 0.000000e+00 : f32
    %17 = vector.broadcast %cst_16 : f32 to vector<128x32xf32>
    %18 = arith.maximumf %16, %17 : vector<128x32xf32>
    %c0_17 = arith.constant 0 : index
    %c0_18 = arith.constant 0 : index
    %19 = vector.load %arg8[%c0_17, %c0_18] : memref<1x32xf32, #tpu.memory_space<vmem>>, vector<1x32xf32>
    %cst_19 = arith.constant dense<0.000000e+00> : vector<1x128xf32>
    %20 = tpu.matmul %19, %18, %cst_19 {dimension_numbers = #tpu.dot_dimension_numbers<[1], [1], [0], [0], [0, 0, 1, 0], [], []>} : vector<1x32xf32>, vector<128x32xf32>, vector<1x128xf32> -> vector<1x128xf32>
    %c0_20 = arith.constant 0 : index
    %21 = memref.load %arg9[%c0_20] : memref<1xf32, #tpu.memory_space<smem>>
    %22 = vector.broadcast %21 : f32 to vector<1x128xf32>
    %23 = arith.addf %20, %22 : vector<1x128xf32>
    %c0_21 = arith.constant 0 : index
    %c0_22 = arith.constant 0 : index
    %24 = vector.load %arg10[%c0_21, %c0_22] : memref<1x128xf32, #tpu.memory_space<vmem>>, vector<1x128xf32>
    tpu.vector_store %arg10[%c0_21, %c0_22], %23 {strides = array<i32>} : memref<1x128xf32, #tpu.memory_space<vmem>>, vector<1x128xf32>,
    return
  }
  func.func @transform_0(%arg0: i32) -> (i32, i32) {
    %c0_i32 = arith.constant 0 : i32
    %c0_i32_0 = arith.constant 0 : i32
    return %arg0, %c0_i32 : i32, i32
  }
  func.func @transform_1(%arg0: i32) -> (i32, i32) {
    %c0_i32 = arith.constant 0 : i32
    %c0_i32_0 = arith.constant 0 : i32
    return %arg0, %c0_i32 : i32, i32
  }
  func.func @transform_2(%arg0: i32) -> (i32, i32) {
    %c0_i32 = arith.constant 0 : i32
    %c0_i32_0 = arith.constant 0 : i32
    %c0_i32_1 = arith.constant 0 : i32
    return %c0_i32, %c0_i32_0 : i32, i32
  }
  func.func @transform_3(%arg0: i32) -> (i32, i32) {
    %c0_i32 = arith.constant 0 : i32
    %c0_i32_0 = arith.constant 0 : i32
    %c0_i32_1 = arith.constant 0 : i32
    return %c0_i32, %c0_i32_0 : i32, i32
  }
  func.func @transform_4(%arg0: i32) -> (i32, i32) {
    %c0_i32 = arith.constant 0 : i32
    %c0_i32_0 = arith.constant 0 : i32
    %c0_i32_1 = arith.constant 0 : i32
    return %c0_i32, %c0_i32_0 : i32, i32
  }
  func.func @transform_5(%arg0: i32) -> (i32, i32) {
    %c0_i32 = arith.constant 0 : i32
    %c0_i32_0 = arith.constant 0 : i32
    %c0_i32_1 = arith.constant 0 : i32
    return %c0_i32, %c0_i32_0 : i32, i32
  }
  func.func @transform_6(%arg0: i32) -> (i32, i32) {
    %c0_i32 = arith.constant 0 : i32
    %c0_i32_0 = arith.constant 0 : i32
    %c0_i32_1 = arith.constant 0 : i32
    return %c0_i32, %c0_i32_0 : i32, i32
  }
  func.func @transform_7(%arg0: i32) -> (i32, i32) {
    %c0_i32 = arith.constant 0 : i32
    %c0_i32_0 = arith.constant 0 : i32
    %c0_i32_1 = arith.constant 0 : i32
    return %c0_i32, %c0_i32_0 : i32, i32
  }
  func.func @transform_8(%arg0: i32) -> i32 {
    %c0_i32 = arith.constant 0 : i32
    %c0_i32_0 = arith.constant 0 : i32
    return %c0_i32 : i32
  }
  func.func @transform_9(%arg0: i32) -> (i32, i32) {
    %c0_i32 = arith.constant 0 : i32
    %c0_i32_0 = arith.constant 0 : i32
    return %c0_i32, %arg0 : i32, i32
  }
}

</mosaic_0001>

<llo_original>
// kernel: tpu_custom_call.1
$region0: #{tpu_custom_call.1}
  #allocation0 [shape = 'u32[]', space=smem, size = 0x4, offset = 0x4, fixed_abs, tag = 'smem constant byte address 0x4 - core index']
  #allocation1 [shape = 'u32[144,128]{1,0:T(1,128)}', space=vmem, size = 0x12000, scoped, tag = 'internal scratch']
  #allocation2 [shape = 'f32[1]{0:T(128)S(6)}', space=smem, size = 0x200, scoped, tag = 'scoped memory for tpu_custom_call.1']
  %s0 = inlined_call_operand.vmem [shape: f32[128,24], index: 0, kind: input, shape index: {}]
  %s1 = inlined_call_operand.vmem [shape: f32[128,8], index: 1, kind: input, shape index: {}]
  %s2 = inlined_call_operand.vmem [shape: f32[24,64], index: 2, kind: input, shape index: {}]
  %s3 = inlined_call_operand.vmem [shape: f32[8,64], index: 3, kind: input, shape index: {}]
  %s4 = inlined_call_operand.vmem [shape: f32[1,64], index: 4, kind: input, shape index: {}]
  %s5 = inlined_call_operand.vmem [shape: f32[64,32], index: 5, kind: input, shape index: {}]
  %s6 = inlined_call_operand.vmem [shape: f32[1,32], index: 6, kind: input, shape index: {}]
  %s7 = inlined_call_operand.vmem [shape: f32[1,32], index: 7, kind: input, shape index: {}]
  %s8 = inlined_call_operand.<no memory space> [shape: f32[1], index: 8, kind: input, shape index: {}]
  %s9 = inlined_call_operand.hbm [shape: f32[1,128], index: 9, kind: output, shape index: {}]
  %s10 = sld [smem:[#allocation0]]
  $region46: #{tpu_custom_call.1} parent=0
    _
  %s12 = ssub.s32 1, %s10
  %s13 = scalar_select 0, %s12, %s10
  %14 = sst [smem:[#allocation2]] %s8
  $region1: #{tpu_custom_call.1} parent=0
    #allocation3 [shape = 'u8[512]{0}', space=vmem, size = 0x400, scoped, tag = 'output window, operand 0, single buffered']
    #allocation4 [shape = 's32[1]{0}', space=sflag, size = 0x4, scoped, tag = 'scoped memory for tpu_custom_call.1']
    %15 = vsyncpa [#allocation4], 0
    // Predicated region
    $region2: #{tpu_custom_call.1} parent=1 // pred_check
      _
    $region3: #{tpu_custom_call.1} parent=1 // pred_check_branch
      %17 = sbr.rel (0) target = $region5
    $region4: #{tpu_custom_call.1} parent=1 // pred_region
      _
    $region5: #{tpu_custom_call.1} parent=1 // pred_fallthru
      _
    // Predicated region
    $region6: #{tpu_custom_call.1} parent=1 // pred_check
      _
    $region7: #{tpu_custom_call.1} parent=1 // pred_check_branch
      %19 = sbr.rel (0) target = $region9
    $region8: #{tpu_custom_call.1} parent=1 // pred_region
      _
    $region9: #{tpu_custom_call.1} parent=1 // pred_fallthru
      _
    // Predicated region
    $region10: #{tpu_custom_call.1} parent=1 // pred_check
      _
    $region11: #{tpu_custom_call.1} parent=1 // pred_check_branch
      %21 = sbr.rel (0) target = $region13
    $region12: #{tpu_custom_call.1} parent=1 // pred_region
      _
    $region13: #{tpu_custom_call.1} parent=1 // pred_fallthru
      _
    // Predicated region
    $region14: #{tpu_custom_call.1} parent=1 // pred_check
      _
    $region15: #{tpu_custom_call.1} parent=1 // pred_check_branch
      %23 = sbr.rel (0) target = $region17
    $region16: #{tpu_custom_call.1} parent=1 // pred_region
      _
    $region17: #{tpu_custom_call.1} parent=1 // pred_fallthru
      _
    // Predicated region
    $region18: #{tpu_custom_call.1} parent=1 // pred_check
      _
    $region19: #{tpu_custom_call.1} parent=1 // pred_check_branch
      %25 = sbr.rel (0) target = $region21
    $region20: #{tpu_custom_call.1} parent=1 // pred_region
      _
    $region21: #{tpu_custom_call.1} parent=1 // pred_fallthru
      _
    // Predicated region
    $region22: #{tpu_custom_call.1} parent=1 // pred_check
      _
    $region23: #{tpu_custom_call.1} parent=1 // pred_check_branch
      %27 = sbr.rel (0) target = $region25
    $region24: #{tpu_custom_call.1} parent=1 // pred_region
      _
    $region25: #{tpu_custom_call.1} parent=1 // pred_fallthru
      _
    // Predicated region
    $region26: #{tpu_custom_call.1} parent=1 // pred_check
      _
    $region27: #{tpu_custom_call.1} parent=1 // pred_check_branch
      %29 = sbr.rel (0) target = $region29
    $region28: #{tpu_custom_call.1} parent=1 // pred_region
      _
    $region29: #{tpu_custom_call.1} parent=1 // pred_fallthru
      _
    // Predicated region
    $region30: #{tpu_custom_call.1} parent=1 // pred_check
      _
    $region31: #{tpu_custom_call.1} parent=1 // pred_check_branch
      %31 = sbr.rel (0) target = $region33
    $region32: #{tpu_custom_call.1} parent=1 // pred_region
      _
    $region33: #{tpu_custom_call.1} parent=1 // pred_fallthru
      _
    // Predicated region
    $region34: #{tpu_custom_call.1} parent=1 // pred_check
      _
    $region35: #{tpu_custom_call.1} parent=1 // pred_check_branch
      %33 = sbr.rel (0) target = $region37
    $region36: #{tpu_custom_call.1} parent=1 // pred_region
      _
    $region37: #{tpu_custom_call.1} parent=1 // pred_fallthru
      _
    %v34 = vld [vmem:[%s0] sm:$0xff]
    %v35 = vld [vmem:[%s0 + $0x8] sm:$0xff]
    %v36 = vld [vmem:[%s0 + $0x10] sm:$0xff]
    %v37 = vld [vmem:[%s0 + $0x18] sm:$0xff]
    %v38 = vld [vmem:[%s0 + $0x20] sm:$0xff]
    %v39 = vld [vmem:[%s0 + $0x28] sm:$0xff]
    %v40 = vld [vmem:[%s0 + $0x30] sm:$0xff]
    %v41 = vld [vmem:[%s0 + $0x38] sm:$0xff]
    %v42 = vld [vmem:[%s0 + $0x40] sm:$0xff]
    %v43 = vld [vmem:[%s0 + $0x48] sm:$0xff]
    %v44 = vld [vmem:[%s0 + $0x50] sm:$0xff]
    %v45 = vld [vmem:[%s0 + $0x58] sm:$0xff]
    %v46 = vld [vmem:[%s0 + $0x60] sm:$0xff]
    %v47 = vld [vmem:[%s0 + $0x68] sm:$0xff]
    %v48 = vld [vmem:[%s0 + $0x70] sm:$0xff]
    %v49 = vld [vmem:[%s0 + $0x78] sm:$0xff]
    %v50 = vld [vmem:[%s2] sm:$0xff]
    %v51 = vld [vmem:[%s2 + $0x8] sm:$0xff]
    %v52 = vld [vmem:[%s2 + $0x10] sm:$0xff]
    %v53 = vld [vmem:[%s1] sm:$0xff]
    %v54 = vld [vmem:[%s1 + $0x8] sm:$0xff]
    %v55 = vld [vmem:[%s1 + $0x10] sm:$0xff]
    %v56 = vld [vmem:[%s1 + $0x18] sm:$0xff]
    %v57 = vld [vmem:[%s1 + $0x20] sm:$0xff]
    %v58 = vld [vmem:[%s1 + $0x28] sm:$0xff]
    %v59 = vld [vmem:[%s1 + $0x30] sm:$0xff]
    %v60 = vld [vmem:[%s1 + $0x38] sm:$0xff]
    %v61 = vld [vmem:[%s1 + $0x40] sm:$0xff]
    %v62 = vld [vmem:[%s1 + $0x48] sm:$0xff]
    %v63 = vld [vmem:[%s1 + $0x50] sm:$0xff]
    %v64 = vld [vmem:[%s1 + $0x58] sm:$0xff]
    %v65 = vld [vmem:[%s1 + $0x60] sm:$0xff]
    %v66 = vld [vmem:[%s1 + $0x68] sm:$0xff]
    %v67 = vld [vmem:[%s1 + $0x70] sm:$0xff]
    %v68 = vld [vmem:[%s1 + $0x78] sm:$0xff]
    %v69 = vld [vmem:[%s3] sm:$0xff]
    %vm70 = vcmask 64512
    %v72 = vsel %vm70, %v53, 0
    %v75 = vsel %vm70, %v54, 0
    %v78 = vsel %vm70, %v55, 0
    %v81 = vsel %vm70, %v56, 0
    %v84 = vsel %vm70, %v57, 0
    %v87 = vsel %vm70, %v58, 0
    %v90 = vsel %vm70, %v59, 0
    %v93 = vsel %vm70, %v60, 0
    %v96 = vsel %vm70, %v61, 0
    %v99 = vsel %vm70, %v62, 0
    %v102 = vsel %vm70, %v63, 0
    %v105 = vsel %vm70, %v64, 0
    %v108 = vsel %vm70, %v65, 0
    %v111 = vsel %vm70, %v66, 0
    %v114 = vsel %vm70, %v67, 0
    %v117 = vsel %vm70, %v68, 0
    %119 = vmatprep.subr.mxu0 0.0
    %120 = vmatpush1.msra.mxu0 %v69
    %121 = vmatprep.subr.mxu0 0.0
    %122 = vmatpush1.msra.mxu0 0.0
    %123 = vmatprep.subr.mxu0 0.0
    %124 = vmatpush1.msra.mxu0 0.0
    %125 = vmatprep.subr.mxu0 0.0
    %126 = vmatpush1.msra.mxu0 0.0
    %127 = vmatprep.subr.mxu0 0.0
    %128 = vmatpush1.msra.mxu0 0.0
    %129 = vmatprep.subr.mxu0 0.0
    %130 = vmatpush1.msra.mxu0 0.0
    %131 = vmatprep.subr.mxu0 0.0
    %132 = vmatpush1.msra.mxu0 0.0
    %133 = vmatprep.subr.mxu0 0.0
    %134 = vmatpush1.msra.mxu0 0.0
    %135 = vmatprep.subr.mxu0 0.0
    %136 = vmatpush1.msra.mxu0 0.0
    %137 = vmatprep.subr.mxu0 0.0
    %138 = vmatpush1.msra.mxu0 0.0
    %139 = vmatprep.subr.mxu0 0.0
    %140 = vmatpush1.msra.mxu0 0.0
    %141 = vmatprep.subr.mxu0 0.0
    %142 = vmatpush1.msra.mxu0 0.0
    %143 = vmatprep.subr.mxu0 0.0
    %144 = vmatpush1.msra.mxu0 0.0
    %145 = vmatprep.subr.mxu0 0.0
    %146 = vmatpush1.msra.mxu0 0.0
    %147 = vmatprep.subr.mxu0 0.0
    %148 = vmatpush1.msra.mxu0 0.0
    %149 = vmatprep.subr.mxu0 0.0
    %150 = vmatpush1.msra.mxu0 0.0
    %151 = vmatprep.subr.mxu0 0.0
    %152 = vmatpush1.msra.mxu0 0.0
    %153 = vmatprep.subr.mxu0 0.0
    %154 = vmatpush1.msra.mxu0 0.0
    %155 = vmatprep.subr.mxu0 0.0
    %156 = vmatpush1.msra.mxu0 0.0
    %157 = vmatprep.subr.mxu0 0.0
    %158 = vmatpush1.msra.mxu0 0.0
    %159 = vmatprep.subr.mxu0 0.0
    %160 = vmatpush1.msra.mxu0 0.0
    %161 = vmatprep.subr.mxu0 0.0
    %162 = vmatpush1.msra.mxu0 0.0
    %163 = vmatprep.subr.mxu0 0.0
    %164 = vmatpush1.msra.mxu0 0.0
    %165 = vmatprep.subr.mxu0 0.0
    %166 = vmatpush1.msra.mxu0 0.0
    %167 = vmatprep.subr.mxu0 0.0
    %168 = vmatpush1.msra.mxu0 0.0
    %169 = vmatprep.subr.mxu0 0.0
    %170 = vmatpush1.msra.mxu0 0.0
    %171 = vmatprep.subr.mxu0 0.0
    %172 = vmatpush1.msra.mxu0 0.0
    %173 = vmatprep.subr.mxu0 0.0
    %174 = vmatpush1.msra.mxu0 0.0
    %175 = vmatprep.subr.mxu0 0.0
    %176 = vmatpush1.msra.mxu0 0.0
    %177 = vmatprep.subr.mxu0 0.0
    %178 = vmatpush1.msra.mxu0 0.0
    %179 = vmatprep.subr.mxu0 0.0
    %180 = vmatpush1.msra.mxu0 0.0
    %181 = vmatprep.subr.mxu0 0.0
    %182 = vmatpush1.msra.mxu0 0.0
    %183 = vmatprep.mubr.f32.mxu0 0.0
    %184 = vmatmul.mubr.f32.gmra.mrb[0].mxu0 %v72
    %v185 = vpop.f32.mrb[0].mxu0
    %v186 = vadd.f32 0.0, %v185
    %v187 = vpop.f32.mrb[0].mxu0
    %188 = vmatprep.mubr.f32.mxu0 0.0
    %189 = vmatmul.mubr.f32.gmra.mrb[0].mxu0 %v75
    %v190 = vpop.f32.mrb[0].mxu0
    %v191 = vadd.f32 0.0, %v190
    %v192 = vpop.f32.mrb[0].mxu0
    %193 = vmatprep.mubr.f32.mxu0 0.0
    %194 = vmatmul.mubr.f32.gmra.mrb[0].mxu0 %v78
    %v195 = vpop.f32.mrb[0].mxu0
    %v196 = vadd.f32 0.0, %v195
    %v197 = vpop.f32.mrb[0].mxu0
    %198 = vmatprep.mubr.f32.mxu0 0.0
    %199 = vmatmul.mubr.f32.gmra.mrb[0].mxu0 %v81
    %v200 = vpop.f32.mrb[0].mxu0
    %v201 = vadd.f32 0.0, %v200
    %v202 = vpop.f32.mrb[0].mxu0
    %203 = vmatprep.mubr.f32.mxu0 0.0
    %204 = vmatmul.mubr.f32.gmra.mrb[0].mxu0 %v84
    %v205 = vpop.f32.mrb[0].mxu0
    %v206 = vadd.f32 0.0, %v205
    %v207 = vpop.f32.mrb[0].mxu0
    %208 = vmatprep.mubr.f32.mxu0 0.0
    %209 = vmatmul.mubr.f32.gmra.mrb[0].mxu0 %v87
    %v210 = vpop.f32.mrb[0].mxu0
    %v211 = vadd.f32 0.0, %v210
    %v212 = vpop.f32.mrb[0].mxu0
    %213 = vmatprep.mubr.f32.mxu0 0.0
    %214 = vmatmul.mubr.f32.gmra.mrb[0].mxu0 %v90
    %v215 = vpop.f32.mrb[0].mxu0
    %v216 = vadd.f32 0.0, %v215
    %v217 = vpop.f32.mrb[0].mxu0
    %218 = vmatprep.mubr.f32.mxu0 0.0
    %219 = vmatmul.mubr.f32.gmra.mrb[0].mxu0 %v93
    %v220 = vpop.f32.mrb[0].mxu0
    %v221 = vadd.f32 0.0, %v220
    %v222 = vpop.f32.mrb[0].mxu0
    %223 = vmatprep.mubr.f32.mxu0 0.0
    %224 = vmatmul.mubr.f32.gmra.mrb[0].mxu0 %v96
    %v225 = vpop.f32.mrb[0].mxu0
    %v226 = vadd.f32 0.0, %v225
    %v227 = vpop.f32.mrb[0].mxu0
    %228 = vmatprep.mubr.f32.mxu0 0.0
    %229 = vmatmul.mubr.f32.gmra.mrb[0].mxu0 %v99
    %v230 = vpop.f32.mrb[0].mxu0
    %v231 = vadd.f32 0.0, %v230
    %v232 = vpop.f32.mrb[0].mxu0
    %233 = vmatprep.mubr.f32.mxu0 0.0
    %234 = vmatmul.mubr.f32.gmra.mrb[0].mxu0 %v102
    %v235 = vpop.f32.mrb[0].mxu0
    %v236 = vadd.f32 0.0, %v235
    %v237 = vpop.f32.mrb[0].mxu0
    %238 = vmatprep.mubr.f32.mxu0 0.0
    %239 = vmatmul.mubr.f32.gmra.mrb[0].mxu0 %v105
    %v240 = vpop.f32.mrb[0].mxu0
    %v241 = vadd.f32 0.0, %v240
    %v242 = vpop.f32.mrb[0].mxu0
    %243 = vmatprep.mubr.f32.mxu0 0.0
    %244 = vmatmul.mubr.f32.gmra.mrb[0].mxu0 %v108
    %v245 = vpop.f32.mrb[0].mxu0
    %v246 = vadd.f32 0.0, %v245
    %v247 = vpop.f32.mrb[0].mxu0
    %248 = vmatprep.mubr.f32.mxu0 0.0
    %249 = vmatmul.mubr.f32.gmra.mrb[0].mxu0 %v111
    %v250 = vpop.f32.mrb[0].mxu0
    %v251 = vadd.f32 0.0, %v250
    %v252 = vpop.f32.mrb[0].mxu0
    %253 = vmatprep.mubr.f32.mxu0 0.0
    %254 = vmatmul.mubr.f32.gmra.mrb[0].mxu0 %v114
    %v255 = vpop.f32.mrb[0].mxu0
    %v256 = vadd.f32 0.0, %v255
    %v257 = vpop.f32.mrb[0].mxu0
    %258 = vmatprep.mubr.f32.mxu0 0.0
    %259 = vmatmul.mubr.f32.gmra.mrb[0].mxu0 %v117
    %v260 = vpop.f32.mrb[0].mxu0
    %v261 = vadd.f32 0.0, %v260
    %v262 = vpop.f32.mrb[0].mxu0
    %263 = vdwg.mxu0
    %vm264 = vcmask 195584
    %v266 = vsel %vm264, %v34, 0
    %v269 = vsel %vm264, %v35, 0
    %v272 = vsel %vm264, %v36, 0
    %v275 = vsel %vm264, %v37, 0
    %v278 = vsel %vm264, %v38, 0
    %v281 = vsel %vm264, %v39, 0
    %v284 = vsel %vm264, %v40, 0
    %v287 = vsel %vm264, %v41, 0
    %v290 = vsel %vm264, %v42, 0
    %v293 = vsel %vm264, %v43, 0
    %v296 = vsel %vm264, %v44, 0
    %v299 = vsel %vm264, %v45, 0
    %v302 = vsel %vm264, %v46, 0
    %v305 = vsel %vm264, %v47, 0
    %v308 = vsel %vm264, %v48, 0
    %v311 = vsel %vm264, %v49, 0
    %313 = vmatprep.subr.mxu0 0.0
    %314 = vmatpush1.msra.mxu0 %v50
    %315 = vmatprep.subr.mxu0 0.0
    %316 = vmatpush1.msra.mxu0 %v51
    %317 = vmatprep.subr.mxu0 0.0
    %318 = vmatpush1.msra.mxu0 %v52
    %319 = vmatprep.subr.mxu0 0.0
    %320 = vmatpush1.msra.mxu0 0.0
    %321 = vmatprep.subr.mxu0 0.0
    %322 = vmatpush1.msra.mxu0 0.0
    %323 = vmatprep.subr.mxu0 0.0
    %324 = vmatpush1.msra.mxu0 0.0
    %325 = vmatprep.subr.mxu0 0.0
    %326 = vmatpush1.msra.mxu0 0.0
    %327 = vmatprep.subr.mxu0 0.0
    %328 = vmatpush1.msra.mxu0 0.0
    %329 = vmatprep.subr.mxu0 0.0
    %330 = vmatpush1.msra.mxu0 0.0
    %331 = vmatprep.subr.mxu0 0.0
    %332 = vmatpush1.msra.mxu0 0.0
    %333 = vmatprep.subr.mxu0 0.0
    %334 = vmatpush1.msra.mxu0 0.0
    %335 = vmatprep.subr.mxu0 0.0
    %336 = vmatpush1.msra.mxu0 0.0
    %337 = vmatprep.subr.mxu0 0.0
    %338 = vmatpush1.msra.mxu0 0.0
    %339 = vmatprep.subr.mxu0 0.0
    %340 = vmatpush1.msra.mxu0 0.0
    %341 = vmatprep.subr.mxu0 0.0
    %342 = vmatpush1.msra.mxu0 0.0
    %343 = vmatprep.subr.mxu0 0.0
    %344 = vmatpush1.msra.mxu0 0.0
    %345 = vmatprep.subr.mxu0 0.0
    %346 = vmatpush1.msra.mxu0 0.0
    %347 = vmatprep.subr.mxu0 0.0
    %348 = vmatpush1.msra.mxu0 0.0
    %349 = vmatprep.subr.mxu0 0.0
    %350 = vmatpush1.msra.mxu0 0.0
    %351 = vmatprep.subr.mxu0 0.0
    %352 = vmatpush1.msra.mxu0 0.0
    %353 = vmatprep.subr.mxu0 0.0
    %354 = vmatpush1.msra.mxu0 0.0
    %355 = vmatprep.subr.mxu0 0.0
    %356 = vmatpush1.msra.mxu0 0.0
    %357 = vmatprep.subr.mxu0 0.0
    %358 = vmatpush1.msra.mxu0 0.0
    %359 = vmatprep.subr.mxu0 0.0
    %360 = vmatpush1.msra.mxu0 0.0
    %361 = vmatprep.subr.mxu0 0.0
    %362 = vmatpush1.msra.mxu0 0.0
    %363 = vmatprep.subr.mxu0 0.0
    %364 = vmatpush1.msra.mxu0 0.0
    %365 = vmatprep.subr.mxu0 0.0
    %366 = vmatpush1.msra.mxu0 0.0
    %367 = vmatprep.subr.mxu0 0.0
    %368 = vmatpush1.msra.mxu0 0.0
    %369 = vmatprep.subr.mxu0 0.0
    %370 = vmatpush1.msra.mxu0 0.0
    %371 = vmatprep.subr.mxu0 0.0
    %372 = vmatpush1.msra.mxu0 0.0
    %373 = vmatprep.subr.mxu0 0.0
    %374 = vmatpush1.msra.mxu0 0.0
    %375 = vmatprep.subr.mxu0 0.0
    %376 = vmatpush1.msra.mxu0 0.0
    %377 = vmatprep.mubr.f32.mxu0 0.0
    %378 = vmatmul.mubr.f32.gmra.mrb[0].mxu0 %v266
    %v379 = vpop.f32.mrb[0].mxu0
    %v380 = vadd.f32 %v186, %v379
    %v381 = vpop.f32.mrb[0].mxu0
    %382 = vmatprep.mubr.f32.mxu0 0.0
    %383 = vmatmul.mubr.f32.gmra.mrb[0].mxu0 %v269
    %v384 = vpop.f32.mrb[0].mxu0
    %v385 = vadd.f32 %v191, %v384
    %v386 = vpop.f32.mrb[0].mxu0
    %387 = vmatprep.mubr.f32.mxu0 0.0
    %388 = vmatmul.mubr.f32.gmra.mrb[0].mxu0 %v272
    %v389 = vpop.f32.mrb[0].mxu0
    %v390 = vadd.f32 %v196, %v389
    %v391 = vpop.f32.mrb[0].mxu0
    %392 = vmatprep.mubr.f32.mxu0 0.0
    %393 = vmatmul.mubr.f32.gmra.mrb[0].mxu0 %v275
    %v394 = vpop.f32.mrb[0].mxu0
    %v395 = vadd.f32 %v201, %v394
    %v396 = vpop.f32.mrb[0].mxu0
    %397 = vmatprep.mubr.f32.mxu0 0.0
    %398 = vmatmul.mubr.f32.gmra.mrb[0].mxu0 %v278
    %v399 = vpop.f32.mrb[0].mxu0
    %v400 = vadd.f32 %v206, %v399
    %v401 = vpop.f32.mrb[0].mxu0
    %402 = vmatprep.mubr.f32.mxu0 0.0
    %403 = vmatmul.mubr.f32.gmra.mrb[0].mxu0 %v281
    %v404 = vpop.f32.mrb[0].mxu0
    %v405 = vadd.f32 %v211, %v404
    %v406 = vpop.f32.mrb[0].mxu0
    %407 = vmatprep.mubr.f32.mxu0 0.0
    %408 = vmatmul.mubr.f32.gmra.mrb[0].mxu0 %v284
    %v409 = vpop.f32.mrb[0].mxu0
    %v410 = vadd.f32 %v216, %v409
    %v411 = vpop.f32.mrb[0].mxu0
    %412 = vmatprep.mubr.f32.mxu0 0.0
    %413 = vmatmul.mubr.f32.gmra.mrb[0].mxu0 %v287
    %v414 = vpop.f32.mrb[0].mxu0
    %v415 = vadd.f32 %v221, %v414
    %v416 = vpop.f32.mrb[0].mxu0
    %417 = vmatprep.mubr.f32.mxu0 0.0
    %418 = vmatmul.mubr.f32.gmra.mrb[0].mxu0 %v290
    %v419 = vpop.f32.mrb[0].mxu0
    %v420 = vadd.f32 %v226, %v419
    %v421 = vpop.f32.mrb[0].mxu0
    %422 = vmatprep.mubr.f32.mxu0 0.0
    %423 = vmatmul.mubr.f32.gmra.mrb[0].mxu0 %v293
    %v424 = vpop.f32.mrb[0].mxu0
    %v425 = vadd.f32 %v231, %v424
    %v426 = vpop.f32.mrb[0].mxu0
    %427 = vmatprep.mubr.f32.mxu0 0.0
    %428 = vmatmul.mubr.f32.gmra.mrb[0].mxu0 %v296
    %v429 = vpop.f32.mrb[0].mxu0
    %v430 = vadd.f32 %v236, %v429
    %v431 = vpop.f32.mrb[0].mxu0
    %432 = vmatprep.mubr.f32.mxu0 0.0
    %433 = vmatmul.mubr.f32.gmra.mrb[0].mxu0 %v299
    %v434 = vpop.f32.mrb[0].mxu0
    %v435 = vadd.f32 %v241, %v434
    %v436 = vpop.f32.mrb[0].mxu0
    %437 = vmatprep.mubr.f32.mxu0 0.0
    %438 = vmatmul.mubr.f32.gmra.mrb[0].mxu0 %v302
    %v439 = vpop.f32.mrb[0].mxu0
    %v440 = vadd.f32 %v246, %v439
    %v441 = vpop.f32.mrb[0].mxu0
    %442 = vmatprep.mubr.f32.mxu0 0.0
    %443 = vmatmul.mubr.f32.gmra.mrb[0].mxu0 %v305
    %v444 = vpop.f32.mrb[0].mxu0
    %v445 = vadd.f32 %v251, %v444
    %v446 = vpop.f32.mrb[0].mxu0
    %447 = vmatprep.mubr.f32.mxu0 0.0
    %448 = vmatmul.mubr.f32.gmra.mrb[0].mxu0 %v308
    %v449 = vpop.f32.mrb[0].mxu0
    %v450 = vadd.f32 %v256, %v449
    %v451 = vpop.f32.mrb[0].mxu0
    %452 = vmatprep.mubr.f32.mxu0 0.0
    %453 = vmatmul.mubr.f32.gmra.mrb[0].mxu0 %v311
    %v454 = vpop.f32.mrb[0].mxu0
    %v455 = vadd.f32 %v261, %v454
    %v456 = vpop.f32.mrb[0].mxu0
    %457 = vdwg.mxu0
    %v458 = vld [vmem:[%s4] sm:$0x1]
    %v460 = vlaneseq
    %v461 = vshrl.u32 %v460, 7
    %v462 = vsub.s32 0, %v461
    %v463 = vrot.slane %v458, %v462
    %v465 = vadd.f32 %v380, %v463
    %v466 = vadd.f32 %v385, %v463
    %v467 = vadd.f32 %v390, %v463
    %v468 = vadd.f32 %v395, %v463
    %v469 = vadd.f32 %v400, %v463
    %v470 = vadd.f32 %v405, %v463
    %v471 = vadd.f32 %v410, %v463
    %v472 = vadd.f32 %v415, %v463
    %v473 = vadd.f32 %v420, %v463
    %v474 = vadd.f32 %v425, %v463
    %v475 = vadd.f32 %v430, %v463
    %v476 = vadd.f32 %v435, %v463
    %v477 = vadd.f32 %v440, %v463
    %v478 = vadd.f32 %v445, %v463
    %v479 = vadd.f32 %v450, %v463
    %v480 = vadd.f32 %v455, %v463
    %v481 = vmax.f32 %v465, 0.0
    %v482 = vmax.f32 %v466, 0.0
    %v483 = vmax.f32 %v467, 0.0
    %v484 = vmax.f32 %v468, 0.0
    %v485 = vmax.f32 %v469, 0.0
    %v486 = vmax.f32 %v470, 0.0
    %v487 = vmax.f32 %v471, 0.0
    %v488 = vmax.f32 %v472, 0.0
    %v489 = vmax.f32 %v473, 0.0
    %v490 = vmax.f32 %v474, 0.0
    %v491 = vmax.f32 %v475, 0.0
    %v492 = vmax.f32 %v476, 0.0
    %v493 = vmax.f32 %v477, 0.0
    %v494 = vmax.f32 %v478, 0.0
    %v495 = vmax.f32 %v479, 0.0
    %v496 = vmax.f32 %v480, 0.0
    %v497 = vld [vmem:[%s5] sm:$0xff]
    %v498 = vld [vmem:[%s5 + $0x8] sm:$0xff]
    %v499 = vld [vmem:[%s5 + $0x10] sm:$0xff]
    %v500 = vld [vmem:[%s5 + $0x18] sm:$0xff]
    %v501 = vld [vmem:[%s5 + $0x20] sm:$0xff]
    %v502 = vld [vmem:[%s5 + $0x28] sm:$0xff]
    %v503 = vld [vmem:[%s5 + $0x30] sm:$0xff]
    %v504 = vld [vmem:[%s5 + $0x38] sm:$0xff]
    %v505 = vld [vmem:[%s6] sm:$0x1]
    %v507 = vlaneseq
    %v508 = vshrl.u32 %v507, 7
    %v509 = vsub.s32 0, %v508
    %v510 = vrot.slane %v505, %v509
    %vm512 = vcmask 523264
    %v514 = vsel %vm512, %v481, 0
    %v517 = vsel %vm512, %v482, 0
    %v520 = vsel %vm512, %v483, 0
    %v523 = vsel %vm512, %v484, 0
    %v526 = vsel %vm512, %v485, 0
    %v529 = vsel %vm512, %v486, 0
    %v532 = vsel %vm512, %v487, 0
    %v535 = vsel %vm512, %v488, 0
    %v538 = vsel %vm512, %v489, 0
    %v541 = vsel %vm512, %v490, 0
    %v544 = vsel %vm512, %v491, 0
    %v547 = vsel %vm512, %v492, 0
    %v550 = vsel %vm512, %v493, 0
    %v553 = vsel %vm512, %v494, 0
    %v556 = vsel %vm512, %v495, 0
    %v559 = vsel %vm512, %v496, 0
    %561 = vmatprep.subr.mxu0 0.0
    %562 = vmatpush1.msra.mxu0 %v497
    %563 = vmatprep.subr.mxu0 0.0
    %564 = vmatpush1.msra.mxu0 %v498
    %565 = vmatprep.subr.mxu0 0.0
    %566 = vmatpush1.msra.mxu0 %v499
    %567 = vmatprep.subr.mxu0 0.0
    %568 = vmatpush1.msra.mxu0 %v500
    %569 = vmatprep.subr.mxu0 0.0
    %570 = vmatpush1.msra.mxu0 %v501
    %571 = vmatprep.subr.mxu0 0.0
    %572 = vmatpush1.msra.mxu0 %v502
    %573 = vmatprep.subr.mxu0 0.0
    %574 = vmatpush1.msra.mxu0 %v503
    %575 = vmatprep.subr.mxu0 0.0
    %576 = vmatpush1.msra.mxu0 %v504
    %577 = vmatprep.subr.mxu0 0.0
    %578 = vmatpush1.msra.mxu0 0.0
    %579 = vmatprep.subr.mxu0 0.0
    %580 = vmatpush1.msra.mxu0 0.0
    %581 = vmatprep.subr.mxu0 0.0
    %582 = vmatpush1.msra.mxu0 0.0
    %583 = vmatprep.subr.mxu0 0.0
    %584 = vmatpush1.msra.mxu0 0.0
    %585 = vmatprep.subr.mxu0 0.0
    %586 = vmatpush1.msra.mxu0 0.0
    %587 = vmatprep.subr.mxu0 0.0
    %588 = vmatpush1.msra.mxu0 0.0
    %589 = vmatprep.subr.mxu0 0.0
    %590 = vmatpush1.msra.mxu0 0.0
    %591 = vmatprep.subr.mxu0 0.0
    %592 = vmatpush1.msra.mxu0 0.0
    %593 = vmatprep.subr.mxu0 0.0
    %594 = vmatpush1.msra.mxu0 0.0
    %595 = vmatprep.subr.mxu0 0.0
    %596 = vmatpush1.msra.mxu0 0.0
    %597 = vmatprep.subr.mxu0 0.0
    %598 = vmatpush1.msra.mxu0 0.0
    %599 = vmatprep.subr.mxu0 0.0
    %600 = vmatpush1.msra.mxu0 0.0
    %601 = vmatprep.subr.mxu0 0.0
    %602 = vmatpush1.msra.mxu0 0.0
    %603 = vmatprep.subr.mxu0 0.0
    %604 = vmatpush1.msra.mxu0 0.0
    %605 = vmatprep.subr.mxu0 0.0
    %606 = vmatpush1.msra.mxu0 0.0
    %607 = vmatprep.subr.mxu0 0.0
    %608 = vmatpush1.msra.mxu0 0.0
    %609 = vmatprep.subr.mxu0 0.0
    %610 = vmatpush1.msra.mxu0 0.0
    %611 = vmatprep.subr.mxu0 0.0
    %612 = vmatpush1.msra.mxu0 0.0
    %613 = vmatprep.subr.mxu0 0.0
    %614 = vmatpush1.msra.mxu0 0.0
    %615 = vmatprep.subr.mxu0 0.0
    %616 = vmatpush1.msra.mxu0 0.0
    %617 = vmatprep.subr.mxu0 0.0
    %618 = vmatpush1.msra.mxu0 0.0
    %619 = vmatprep.subr.mxu0 0.0
    %620 = vmatpush1.msra.mxu0 0.0
    %621 = vmatprep.subr.mxu0 0.0
    %622 = vmatpush1.msra.mxu0 0.0
    %623 = vmatprep.subr.mxu0 0.0
    %624 = vmatpush1.msra.mxu0 0.0
    %625 = vmatprep.mubr.f32.mxu0 0.0
    %626 = vmatmul.mubr.f32.gmra.mrb[0].mxu0 %v514
    %v627 = vpop.f32.mrb[0].mxu0
    %v628 = vadd.f32 %v510, %v627
    %v629 = vpop.f32.mrb[0].mxu0
    %630 = vmatprep.mubr.f32.mxu0 0.0
    %631 = vmatmul.mubr.f32.gmra.mrb[0].mxu0 %v517
    %v632 = vpop.f32.mrb[0].mxu0
    %v633 = vadd.f32 %v510, %v632
    %v634 = vpop.f32.mrb[0].mxu0
    %635 = vmatprep.mubr.f32.mxu0 0.0
    %636 = vmatmul.mubr.f32.gmra.mrb[0].mxu0 %v520
    %v637 = vpop.f32.mrb[0].mxu0
    %v638 = vadd.f32 %v510, %v637
    %v639 = vpop.f32.mrb[0].mxu0
    %640 = vmatprep.mubr.f32.mxu0 0.0
    %641 = vmatmul.mubr.f32.gmra.mrb[0].mxu0 %v523
    %v642 = vpop.f32.mrb[0].mxu0
    %v643 = vadd.f32 %v510, %v642
    %v644 = vpop.f32.mrb[0].mxu0
    %645 = vmatprep.mubr.f32.mxu0 0.0
    %646 = vmatmul.mubr.f32.gmra.mrb[0].mxu0 %v526
    %v647 = vpop.f32.mrb[0].mxu0
    %v648 = vadd.f32 %v510, %v647
    %v649 = vpop.f32.mrb[0].mxu0
    %650 = vmatprep.mubr.f32.mxu0 0.0
    %651 = vmatmul.mubr.f32.gmra.mrb[0].mxu0 %v529
    %v652 = vpop.f32.mrb[0].mxu0
    %v653 = vadd.f32 %v510, %v652
    %v654 = vpop.f32.mrb[0].mxu0
    %655 = vmatprep.mubr.f32.mxu0 0.0
    %656 = vmatmul.mubr.f32.gmra.mrb[0].mxu0 %v532
    %v657 = vpop.f32.mrb[0].mxu0
    %v658 = vadd.f32 %v510, %v657
    %v659 = vpop.f32.mrb[0].mxu0
    %660 = vmatprep.mubr.f32.mxu0 0.0
    %661 = vmatmul.mubr.f32.gmra.mrb[0].mxu0 %v535
    %v662 = vpop.f32.mrb[0].mxu0
    %v663 = vadd.f32 %v510, %v662
    %v664 = vpop.f32.mrb[0].mxu0
    %665 = vmatprep.mubr.f32.mxu0 0.0
    %666 = vmatmul.mubr.f32.gmra.mrb[0].mxu0 %v538
    %v667 = vpop.f32.mrb[0].mxu0
    %v668 = vadd.f32 %v510, %v667
    %v669 = vpop.f32.mrb[0].mxu0
    %670 = vmatprep.mubr.f32.mxu0 0.0
    %671 = vmatmul.mubr.f32.gmra.mrb[0].mxu0 %v541
    %v672 = vpop.f32.mrb[0].mxu0
    %v673 = vadd.f32 %v510, %v672
    %v674 = vpop.f32.mrb[0].mxu0
    %675 = vmatprep.mubr.f32.mxu0 0.0
    %676 = vmatmul.mubr.f32.gmra.mrb[0].mxu0 %v544
    %v677 = vpop.f32.mrb[0].mxu0
    %v678 = vadd.f32 %v510, %v677
    %v679 = vpop.f32.mrb[0].mxu0
    %680 = vmatprep.mubr.f32.mxu0 0.0
    %681 = vmatmul.mubr.f32.gmra.mrb[0].mxu0 %v547
    %v682 = vpop.f32.mrb[0].mxu0
    %v683 = vadd.f32 %v510, %v682
    %v684 = vpop.f32.mrb[0].mxu0
    %685 = vmatprep.mubr.f32.mxu0 0.0
    %686 = vmatmul.mubr.f32.gmra.mrb[0].mxu0 %v550
    %v687 = vpop.f32.mrb[0].mxu0
    %v688 = vadd.f32 %v510, %v687
    %v689 = vpop.f32.mrb[0].mxu0
    %690 = vmatprep.mubr.f32.mxu0 0.0
    %691 = vmatmul.mubr.f32.gmra.mrb[0].mxu0 %v553
    %v692 = vpop.f32.mrb[0].mxu0
    %v693 = vadd.f32 %v510, %v692
    %v694 = vpop.f32.mrb[0].mxu0
    %695 = vmatprep.mubr.f32.mxu0 0.0
    %696 = vmatmul.mubr.f32.gmra.mrb[0].mxu0 %v556
    %v697 = vpop.f32.mrb[0].mxu0
    %v698 = vadd.f32 %v510, %v697
    %v699 = vpop.f32.mrb[0].mxu0
    %700 = vmatprep.mubr.f32.mxu0 0.0
    %701 = vmatmul.mubr.f32.gmra.mrb[0].mxu0 %v559
    %v702 = vpop.f32.mrb[0].mxu0
    %v703 = vadd.f32 %v510, %v702
    %v704 = vpop.f32.mrb[0].mxu0
    %705 = vdwg.mxu0
    %v706 = vmax.f32 %v628, 0.0
    %v707 = vmax.f32 %v633, 0.0
    %v708 = vmax.f32 %v638, 0.0
    %v709 = vmax.f32 %v643, 0.0
    %v710 = vmax.f32 %v648, 0.0
    %v711 = vmax.f32 %v653, 0.0
    %v712 = vmax.f32 %v658, 0.0
    %v713 = vmax.f32 %v663, 0.0
    %v714 = vmax.f32 %v668, 0.0
    %v715 = vmax.f32 %v673, 0.0
    %v716 = vmax.f32 %v678, 0.0
    %v717 = vmax.f32 %v683, 0.0
    %v718 = vmax.f32 %v688, 0.0
    %v719 = vmax.f32 %v693, 0.0
    %v720 = vmax.f32 %v698, 0.0
    %v721 = vmax.f32 %v703, 0.0
    %v722 = vld [vmem:[%s7] sm:$0x1]
    %s723 = sld [smem:[#allocation2]]
    %v724 = vstv %s723
    %vm725 = vcmask 261120
    %v727 = vsel %vm725, %v722, 0
    %v730 = vsel %vm725, %v706, 0
    %v733 = vsel %vm725, %v707, 0
    %v736 = vsel %vm725, %v708, 0
    %v739 = vsel %vm725, %v709, 0
    %v742 = vsel %vm725, %v710, 0
    %v745 = vsel %vm725, %v711, 0
    %v748 = vsel %vm725, %v712, 0
    %v751 = vsel %vm725, %v713, 0
    %v754 = vsel %vm725, %v714, 0
    %v757 = vsel %vm725, %v715, 0
    %v760 = vsel %vm725, %v716, 0
    %v763 = vsel %vm725, %v717, 0
    %v766 = vsel %vm725, %v718, 0
    %v769 = vsel %vm725, %v719, 0
    %v772 = vsel %vm725, %v720, 0
    %v775 = vsel %vm725, %v721, 0
    %777 = vmatprep.subr.mxu0 0.0
    %778 = vmatpush1.xpose.msra.mxu0 %v730
    %779 = vmatprep.subr.mxu0 0.0
    %780 = vmatpush1.xpose.msra.mxu0 %v733
    %781 = vmatprep.subr.mxu0 0.0
    %782 = vmatpush1.xpose.msra.mxu0 %v736
    %783 = vmatprep.subr.mxu0 0.0
    %784 = vmatpush1.xpose.msra.mxu0 %v739
    %785 = vmatprep.subr.mxu0 0.0
    %786 = vmatpush1.xpose.msra.mxu0 %v742
    %787 = vmatprep.subr.mxu0 0.0
    %788 = vmatpush1.xpose.msra.mxu0 %v745
    %789 = vmatprep.subr.mxu0 0.0
    %790 = vmatpush1.xpose.msra.mxu0 %v748
    %791 = vmatprep.subr.mxu0 0.0
    %792 = vmatpush1.xpose.msra.mxu0 %v751
    %793 = vmatprep.subr.mxu0 0.0
    %794 = vmatpush1.xpose.msra.mxu0 %v754
    %795 = vmatprep.subr.mxu0 0.0
    %796 = vmatpush1.xpose.msra.mxu0 %v757
    %797 = vmatprep.subr.mxu0 0.0
    %798 = vmatpush1.xpose.msra.mxu0 %v760
    %799 = vmatprep.subr.mxu0 0.0
    %800 = vmatpush1.xpose.msra.mxu0 %v763
    %801 = vmatprep.subr.mxu0 0.0
    %802 = vmatpush1.xpose.msra.mxu0 %v766
    %803 = vmatprep.subr.mxu0 0.0
    %804 = vmatpush1.xpose.msra.mxu0 %v769
    %805 = vmatprep.subr.mxu0 0.0
    %806 = vmatpush1.xpose.msra.mxu0 %v772
    %807 = vmatprep.subr.mxu0 0.0
    %808 = vmatpush1.xpose.msra.mxu0 %v775
    %809 = vmatprep.subr.mxu0 0.0
    %810 = vmatpush1.xpose.msra.mxu0 0.0
    %811 = vmatprep.subr.mxu0 0.0
    %812 = vmatpush1.xpose.msra.mxu0 0.0
    %813 = vmatprep.subr.mxu0 0.0
    %814 = vmatpush1.xpose.msra.mxu0 0.0
    %815 = vmatprep.subr.mxu0 0.0
    %816 = vmatpush1.xpose.msra.mxu0 0.0
    %817 = vmatprep.subr.mxu0 0.0
    %818 = vmatpush1.xpose.msra.mxu0 0.0
    %819 = vmatprep.subr.mxu0 0.0
    %820 = vmatpush1.xpose.msra.mxu0 0.0
    %821 = vmatprep.subr.mxu0 0.0
    %822 = vmatpush1.xpose.msra.mxu0 0.0
    %823 = vmatprep.subr.mxu0 0.0
    %824 = vmatpush1.xpose.msra.mxu0 0.0
    %825 = vmatprep.subr.mxu0 0.0
    %826 = vmatpush1.xpose.msra.mxu0 0.0
    %827 = vmatprep.subr.mxu0 0.0
    %828 = vmatpush1.xpose.msra.mxu0 0.0
    %829 = vmatprep.subr.mxu0 0.0
    %830 = vmatpush1.xpose.msra.mxu0 0.0
    %831 = vmatprep.subr.mxu0 0.0
    %832 = vmatpush1.xpose.msra.mxu0 0.0
    %833 = vmatprep.subr.mxu0 0.0
    %834 = vmatpush1.xpose.msra.mxu0 0.0
    %835 = vmatprep.subr.mxu0 0.0
    %836 = vmatpush1.xpose.msra.mxu0 0.0
    %837 = vmatprep.subr.mxu0 0.0
    %838 = vmatpush1.xpose.msra.mxu0 0.0
    %839 = vmatprep.subr.mxu0 0.0
    %840 = vmatpush1.xpose.msra.mxu0 0.0
    %841 = vmatprep.mubr.f32.mxu0 0.0
    %842 = vmatmul.mubr.f32.gmra.mrb[0].mxu0 %v727
    %v843 = vpop.f32.mrb[0].mxu0
    %v844 = vadd.f32 %v724, %v843
    %v845 = vpop.f32.mrb[0].mxu0
    %846 = vdwg.mxu0
    %847 = vst [vmem:[#allocation3] sm:$0x1] %v844
    // Predicated region
    $region38: #{tpu_custom_call.1} parent=1 // pred_check
      _
    $region39: #{tpu_custom_call.1} parent=1 // pred_check_branch
      %849 = sbr.rel (0) target = $region41
    $region40: #{tpu_custom_call.1} parent=1 // pred_region
      %s851 = ssub.s32 16, 16
      %852 = vsyncadd [#allocation4], %s851
      %s854 = sshll.u32 [#allocation3], 4
      %s855 = int_to_ptr.vmem [resolvable:$true] %s854
      %857 = dma.vmem_to_hbm [thread:$0]  %s855, 16, %s9, [#allocation4]
    $region41: #{tpu_custom_call.1} parent=1 // pred_fallthru
      _
    // Predicated region
    $region42: #{tpu_custom_call.1} parent=1 // pred_check
      _
    $region43: #{tpu_custom_call.1} parent=1 // pred_check_branch
      %859 = sbr.rel (0) target = $region45
    $region44: #{tpu_custom_call.1} parent=1 // pred_region
      %860 = dma.done [#allocation4], 16
    $region45: #{tpu_custom_call.1} parent=1 // pred_fallthru
      _
    %861 = vsyncpa [#allocation4], 1

</llo_original>
